<compile_context>
chip_gen: v7x
topology: tpu7x:2x2x1
jax: 0.10.0
libtpu: 0.0.40
codegen_flags: <defaults>
</compile_context>

<pallas_src>
import jax
import jax.numpy as jnp
from jax import lax
from jax.experimental import pallas as pl
from jax.experimental.pallas import tpu as pltpu

LANE = 128


def _round_up(n, m):
    return ((n + m - 1) // m) * m


def _cdiv(a, b):
    return (a + b - 1) // b


# ----------------------------------------------------------------------------
# Kernel
# ----------------------------------------------------------------------------
def _uncertainty_kernel(x_ref, wc_ref, bc_ref, w1_ref, b1_ref, w2_ref, b2_ref,
                        out_ref, acc_ref):
    k = pl.program_id(1)
    cdt = wc_ref.dtype                       # compute dtype (bf16)

    # classifier stand-in (Linear + ReLU), restricted to this hidden-dim chunk.
    # Rows (batch) are independent, so over-run rows in the last batch tile
    # are harmless garbage that the wrapper discards.
    x = x_ref[...].astype(cdt)
    emb = jnp.dot(x, wc_ref[...], preferred_element_type=jnp.float32) + bc_ref[...]
    emb = jnp.maximum(emb, 0.0)

    # Fused first Linear of both heads, accumulated over hidden-dim chunks.
    part = jnp.dot(emb.astype(cdt), w1_ref[...], preferred_element_type=jnp.float32)

    @pl.when(k == 0)
    def _():
        acc_ref[...] = part

    @pl.when(k > 0)
    def _():
        acc_ref[...] += part

    @pl.when(k == pl.num_programs(1) - 1)
    def _():
        # ReLU (Dropout = identity in eval), then the fused block-diagonal
        # final projections: z[:, 0] = mean, z[:, 1] = pre-softplus std.
        h = jnp.maximum(acc_ref[...] + b1_ref[...], 0.0)
        z = jnp.dot(h.astype(cdt), w2_ref[...],
                    preferred_element_type=jnp.float32) + b2_ref[...]
        # Put batch on the lane axis (XLU transpose, otherwise idle) so the
        # writeback is a tiny lane-dense (2, tile_b) f32 block instead of a
        # mostly-padding (tile_b, 128) slab.
        zt = jnp.transpose(z)[0:2, :]                       # (2, tile_b)
        # torch.nn.Softplus (beta=1, threshold=20), applied to the std row only.
        sp = jnp.where(zt > 20.0, zt,
                       jnp.log1p(jnp.exp(jnp.minimum(zt, 20.0))))
        row = lax.broadcasted_iota(jnp.int32, zt.shape, 0)
        out_ref[...] = jnp.where(row == 1, sp, zt)          # row0=mean, row1=std


# ----------------------------------------------------------------------------
# Parameter packing (hidden-dim padding + head fusion + bf16 cast)
# ----------------------------------------------------------------------------
def pack_params(p, compute_dtype=jnp.bfloat16):
    d_in, h = p["wc"].shape
    h_pad = _round_up(h, LANE)

    # classifier stand-in (d_in is NOT padded: x is consumed unpadded).
    wc = jnp.zeros((d_in, h_pad), jnp.float32).at[:, :h].set(p["wc"])
    bc = jnp.zeros((1, h_pad), jnp.float32).at[:, :h].set(p["bc"])

    # Fused first layers of the mean/std heads: [H_pad, 2*H_pad]
    w1 = jnp.zeros((h_pad, 2 * h_pad), jnp.float32)
    w1 = w1.at[:h, :h].set(p["wm1"]).at[:h, h_pad:h_pad + h].set(p["ws1"])
    b1 = jnp.zeros((1, 2 * h_pad), jnp.float32)
    b1 = b1.at[:, :h].set(p["bm1"]).at[:, h_pad:h_pad + h].set(p["bs1"])

    # Fused, lane-padded final projections: [2*H_pad, 128] block-diagonal.
    w2 = jnp.zeros((2 * h_pad, LANE), jnp.float32)
    w2 = w2.at[:h, 0].set(p["wm2"][:, 0]).at[h_pad:h_pad + h, 1].set(p["ws2"][:, 0])
    b2 = jnp.zeros((1, LANE), jnp.float32)
    b2 = b2.at[0, 0].set(p["bm2"][0, 0]).at[0, 1].set(p["bs2"][0, 0])

    cd = compute_dtype
    return dict(wc=wc.astype(cd), bc=bc, w1=w1.astype(cd), b1=b1,
                w2=w2.astype(cd), b2=b2, d_in=d_in, h=h, h_pad=h_pad)


# ----------------------------------------------------------------------------
# Tiling / VMEM configuration
# ----------------------------------------------------------------------------
def _vmem_budget_bytes():
    """~80% of this generation's physical VMEM (v5e/v6e: 128 MiB, v7x: 64 MiB)."""
    cap = 64 << 20                       # conservative default if the query fails
    try:
        cap = int(getattr(pltpu.get_tpu_info(), "vmem_capacity_bytes", cap))
    except Exception:
        pass
    return int(0.8 * cap)


def _vmem_estimate(tile_b, d_in, h_pad, tk, k_chunks):
    f32, bf16 = 4, 2
    n2h = 2 * h_pad
    x_io = 2 * tile_b * d_in * f32                    # double-buffered x tile (f32)
    out_io = 2 * 2 * tile_b * f32                     # double-buffered (2, tile_b) out
    acc = tile_b * n2h * f32                          # f32 accumulator scratch
    resid = n2h * LANE * bf16 + (n2h + LANE) * f32    # W2 + b1 + b2 (Buffered(1))
    nbuf = 1 if k_chunks == 1 else 2
    chunks = nbuf * ((d_in * tk + tk * n2h) * bf16 + tk * f32)   # wc / bc / W1 chunks
    temps = tile_b * (tk + n2h + 2 * LANE) * f32      # emb chunk, part/h, z + transpose
    return x_io + out_io + acc + resid + chunks + temps


def _choose_config(B, d_in, h_pad, tile_b_req, k_chunks, budget):
    """Pick (tile_b, k_chunks, tk, vmem_estimate) fitting the VMEM budget."""
    n128 = h_pad // LANE
    if k_chunks is not None:
        if n128 % k_chunks:
            raise ValueError("k_chunks must divide h_pad // 128")
        k_cands = [k_chunks]
    else:
        k_cands = [c for c in range(1, n128 + 1) if n128 % c == 0]

    if B <= LANE:
        tile_cands = [_round_up(B, 8)]                # single small tile
    else:
        # Lane-dense tiles (multiples of 128); cap so the grid keeps >= 2 steps
        # (both v7x TensorCores busy), then halve until everything fits.
        cap = max(LANE, _round_up(_cdiv(B, 2), LANE))
        t = max(LANE, min(_round_up(tile_b_req, LANE), cap))
        tile_cands = []
        while t >= LANE:
            tile_cands.append(t)
            t = ((t // 2) // LANE) * LANE

    for tb in tile_cands:
        for kc in k_cands:
            tk = h_pad // kc
            est = _vmem_estimate(tb, d_in, h_pad, tk, kc)
            if est <= budget:
                return tb, kc, tk, est
    tb, kc = tile_cands[-1], k_cands[-1]              # best effort
    tk = h_pad // kc
    return tb, kc, tk, _vmem_estimate(tb, d_in, h_pad, tk, kc)


# ----------------------------------------------------------------------------
# Wrapper
# ----------------------------------------------------------------------------
def uncertainty_forward(x, packed, tile_b=1024, k_chunks=None):
    """Full UncertaintyNetwork forward. Returns (mean, stdev) of the Normal."""
    if x.dtype != jnp.float32:
        x = x.astype(jnp.float32)
    B, d_in = x.shape
    assert d_in == packed["d_in"]
    h_pad = packed["h_pad"]
    n2h = 2 * h_pad

    budget = _vmem_budget_bytes()
    tile_b, n_k, tk, est = _choose_config(B, d_in, h_pad, tile_b, k_chunks, budget)
    steps_b = _cdiv(B, tile_b)
    b_total = steps_b * tile_b
    grid = (steps_b, n_k)

    resident = dict(pipeline_mode=pl.Buffered(1))     # constant-index residents
    chunked = resident if n_k == 1 else {}            # K-chunked: keep double-buffer

    in_specs = [
        pl.BlockSpec((tile_b, d_in), lambda i, k: (i, 0)),             # x (f32, unpadded)
        pl.BlockSpec((d_in, tk), lambda i, k: (0, k), **chunked),      # wc chunk
        pl.BlockSpec((1, tk), lambda i, k: (0, k), **chunked),         # bc chunk
        pl.BlockSpec((tk, n2h), lambda i, k: (k, 0), **chunked),       # fused W1 chunk
        pl.BlockSpec((1, n2h), lambda i, k: (0, 0), **resident),       # fused b1
        pl.BlockSpec((n2h, LANE), lambda i, k: (0, 0), **resident),    # fused W2
        pl.BlockSpec((1, LANE), lambda i, k: (0, 0), **resident),      # fused b2
    ]
    out_specs = pl.BlockSpec((2, tile_b), lambda i, k: (0, i))         # lane-dense out

    w_bytes = sum(int(packed[n].size) * jnp.dtype(packed[n].dtype).itemsize
                  for n in ("wc", "bc", "w1", "b1", "w2", "b2"))
    flops = 2 * b_total * (d_in * h_pad + h_pad * n2h + n2h * LANE)
    cost = pl.CostEstimate(
        flops=int(flops),
        transcendentals=int(4 * b_total),
        bytes_accessed=int(x.size * 4
                           + w_bytes * (1 if n_k == 1 else steps_b)
                           + 2 * b_total * 4),
    )
    vmem_limit = int(min(budget, max(int(1.5 * est), 32 << 20)))

    out = pl.pallas_call(
        _uncertainty_kernel,
        out_shape=jax.ShapeDtypeStruct((2, b_total), jnp.float32),
        grid=grid,
        in_specs=in_specs,
        out_specs=out_specs,
        scratch_shapes=[pltpu.VMEM((tile_b, n2h), jnp.float32)],
        compiler_params=pltpu.CompilerParams(
            dimension_semantics=("parallel", "arbitrary"),
            vmem_limit_bytes=vmem_limit,
        ),
        cost_estimate=cost,
    )(x, packed["wc"], packed["bc"], packed["w1"], packed["b1"],
      packed["w2"], packed["b2"])

    mean = out[0, :B].reshape(B, 1)
    stdev = out[1, :B].reshape(B, 1)
    return mean, stdev


# ----------------------------------------------------------------------------
# Init + pure-JAX reference
# ----------------------------------------------------------------------------
def init_params(key, d_in, n_hidden):
    ks = jax.random.split(key, 5)

    def lin(k, fan_in, fan_out):
        bound = 1.0 / jnp.sqrt(jnp.float32(fan_in))
        kw, kb = jax.random.split(k)
        w = jax.random.uniform(kw, (fan_in, fan_out), jnp.float32, -bound, bound)
        b = jax.random.uniform(kb, (1, fan_out), jnp.float32, -bound, bound)
        return w, b

    wc, bc = lin(ks[0], d_in, n_hidden)          # classifier stand-in
    wm1, bm1 = lin(ks[1], n_hidden, n_hidden)    # mean_layer[0]
    wm2, bm2 = lin(ks[2], n_hidden, 1)           # mean_layer[3]
    ws1, bs1 = lin(ks[3], n_hidden, n_hidden)    # std_layer[0]
    ws2, bs2 = lin(ks[4], n_hidden, 1)           # std_layer[3]
    return dict(wc=wc, bc=bc, wm1=wm1, bm1=bm1, wm2=wm2, bm2=bm2,
                ws1=ws1, bs1=bs1, ws2=ws2, bs2=bs2)


def reference_forward(x, p, compute_dtype=jnp.bfloat16):
    """Pure-JAX reference with the same bf16 operand rounding as the kernel."""
    cd, f32 = compute_dtype, jnp.float32
    emb = jnp.maximum(
        jnp.dot(x.astype(cd), p["wc"].astype(cd), preferred_element_type=f32)
        + p["bc"], 0.0)
    hm = jnp.maximum(
        jnp.dot(emb.astype(cd), p["wm1"].astype(cd), preferred_element_type=f32)
        + p["bm1"], 0.0)
    mean = jnp.dot(hm.astype(cd), p["wm2"].astype(cd),
                   preferred_element_type=f32) + p["bm2"]
    hs = jnp.maximum(
        jnp.dot(emb.astype(cd), p["ws1"].astype(cd), preferred_element_type=f32)
        + p["bs1"], 0.0)
    z = jnp.dot(hs.astype(cd), p["ws2"].astype(cd),
                preferred_element_type=f32) + p["bs2"]
    stdev = jnp.where(z > 20.0, z, jnp.log1p(jnp.exp(jnp.minimum(z, 20.0))))
    return mean, stdev


if __name__ == "__main__":
    key = jax.random.PRNGKey(0)
    k_x1, k_p1, k_x2, k_p2 = jax.random.split(key, 4)

    # 1) Small demo shape: resident-weight path, single batch tile.
    B1, D1, H1 = 8, 16, 32
    x1 = jax.random.normal(k_x1, (B1, D1), jnp.float32)
    p1 = init_params(k_p1, D1, H1)
    mean1, std1 = uncertainty_forward(x1, pack_params(p1))
    jax.block_until_ready((mean1, std1))
    r_mean1, r_std1 = reference_forward(x1, p1)
    assert mean1.shape == (B1, 1) and std1.shape == (B1, 1)
    assert jnp.allclose(mean1, r_mean1, atol=5e-3, rtol=5e-3)
    assert jnp.allclose(std1, r_std1, atol=5e-3, rtol=5e-3)
    assert bool(jnp.all(std1 > 0.0))            # Softplus output is positive

    # 2) Exercise the multi-batch-tile (with remainder) + K-split accumulator
    #    path that large-H configs fall back to on v7x.
    B2, D2, H2 = 300, 16, 256
    x2 = jax.random.normal(k_x2, (B2, D2), jnp.float32)
    p2 = init_params(k_p2, D2, H2)
    mean2, std2 = uncertainty_forward(x2, pack_params(p2), tile_b=128, k_chunks=2)
    jax.block_until_ready((mean2, std2))
    r_mean2, r_std2 = reference_forward(x2, p2)
    assert mean2.shape == (B2, 1) and std2.shape == (B2, 1)
    assert jnp.allclose(mean2, r_mean2, atol=1e-2, rtol=1e-2)
    assert jnp.allclose(std2, r_std2, atol=1e-2, rtol=1e-2)
    assert bool(jnp.all(std2 > 0.0))

    print("KERNEL_OK")
</pallas_src>

<mosaic_0001>
module attributes {stable_mosaic.version = 11 : i64} {
  func.func @_uncertainty_kernel(%arg0: i32, %arg1: i32, %arg2: memref<8x16xf32, #tpu.memory_space<vmem>>, %arg3: memref<16x128xbf16, #tpu.memory_space<vmem>>, %arg4: memref<1x128xf32, #tpu.memory_space<vmem>>, %arg5: memref<128x256xbf16, #tpu.memory_space<vmem>>, %arg6: memref<1x256xf32, #tpu.memory_space<vmem>>, %arg7: memref<256x128xbf16, #tpu.memory_space<vmem>>, %arg8: memref<1x128xf32, #tpu.memory_space<vmem>>, %arg9: memref<2x8xf32, #tpu.memory_space<vmem>>, %arg10: memref<8x256xf32, #tpu.memory_space<vmem>>) attributes {dimension_semantics = [#tpu.dimension_semantics<parallel>, #tpu.dimension_semantics<arbitrary>], iteration_bounds = array<i64: 1, 1>, scalar_prefetch = 0 : i64, scratch_operands = 1 : i64, tpu.core_type = #tpu.core_type<tc>, window_params = [{transform_indices = @transform_0, window_bounds = array<i64: 8, 16>}, {pipeline_mode = #tpu.pipeline_mode<synchronous>, transform_indices = @transform_1, window_bounds = array<i64: 16, 128>}, {pipeline_mode = #tpu.pipeline_mode<synchronous>, transform_indices = @transform_2, window_bounds = array<i64: 1, 128>}, {pipeline_mode = #tpu.pipeline_mode<synchronous>, transform_indices = @transform_3, window_bounds = array<i64: 128, 256>}, {pipeline_mode = #tpu.pipeline_mode<synchronous>, transform_indices = @transform_4, window_bounds = array<i64: 1, 256>}, {pipeline_mode = #tpu.pipeline_mode<synchronous>, transform_indices = @transform_5, window_bounds = array<i64: 256, 128>}, {pipeline_mode = #tpu.pipeline_mode<synchronous>, transform_indices = @transform_6, window_bounds = array<i64: 1, 128>}, {transform_indices = @transform_7, window_bounds = array<i64: 2, 8>}]} {
    %c0 = arith.constant 0 : index
    %c0_0 = arith.constant 0 : index
    %0 = vector.load %arg2[%c0, %c0_0] : memref<8x16xf32, #tpu.memory_space<vmem>>, vector<8x16xf32>
    %1 = arith.truncf %0 : vector<8x16xf32> to vector<8x16xbf16>
    %c0_1 = arith.constant 0 : index
    %c0_2 = arith.constant 0 : index
    %2 = vector.load %arg3[%c0_1, %c0_2] : memref<16x128xbf16, #tpu.memory_space<vmem>>, vector<16x128xbf16>
    %cst = arith.constant dense<0.000000e+00> : vector<8x128xf32>
    %3 = tpu.matmul %1, %2, %cst {dimension_numbers = #tpu.dot_dimension_numbers<[1], [0], [0], [1], [0, 0, 1, 1], [], []>} : vector<8x16xbf16>, vector<16x128xbf16>, vector<8x128xf32> -> vector<8x128xf32>
    %c0_3 = arith.constant 0 : index
    %c0_4 = arith.constant 0 : index
    %4 = vector.load %arg4[%c0_3, %c0_4] : memref<1x128xf32, #tpu.memory_space<vmem>>, vector<1x128xf32>
    %5 = vector.broadcast %4 : vector<1x128xf32> to vector<8x128xf32>
    %6 = arith.addf %3, %5 : vector<8x128xf32>
    %cst_5 = arith.constant 0.000000e+00 : f32
    %7 = vector.broadcast %cst_5 : f32 to vector<8x128xf32>
    %8 = arith.maximumf %6, %7 : vector<8x128xf32>
    %9 = arith.truncf %8 : vector<8x128xf32> to vector<8x128xbf16>
    %c0_6 = arith.constant 0 : index
    %c0_7 = arith.constant 0 : index
    %10 = vector.load %arg5[%c0_6, %c0_7] : memref<128x256xbf16, #tpu.memory_space<vmem>>, vector<128x256xbf16>
    %cst_8 = arith.constant dense<0.000000e+00> : vector<8x256xf32>
    %11 = tpu.matmul %9, %10, %cst_8 {dimension_numbers = #tpu.dot_dimension_numbers<[1], [0], [0], [1], [0, 0, 1, 1], [], []>} : vector<8x128xbf16>, vector<128x256xbf16>, vector<8x256xf32> -> vector<8x256xf32>
    %c0_i32 = arith.constant 0 : i32
    %12 = arith.cmpi eq, %arg1, %c0_i32 : i32
    %13 = arith.extui %12 : i1 to i32
    %c0_i32_9 = arith.constant 0 : i32
    %14 = arith.cmpi ne, %13, %c0_i32_9 : i32
    scf.if %14 {
      %c0_14 = arith.constant 0 : index
      %c0_15 = arith.constant 0 : index
      %21 = vector.load %arg10[%c0_14, %c0_15] : memref<8x256xf32, #tpu.memory_space<vmem>>, vector<8x256xf32>
      tpu.vector_store %arg10[%c0_14, %c0_15], %11 {strides = array<i32>} : memref<8x256xf32, #tpu.memory_space<vmem>>, vector<8x256xf32>,
    } else {
    }
    %c0_i32_10 = arith.constant 0 : i32
    %15 = arith.cmpi sgt, %arg1, %c0_i32_10 : i32
    %16 = arith.extui %15 : i1 to i32
    %c0_i32_11 = arith.constant 0 : i32
    %17 = arith.cmpi ne, %16, %c0_i32_11 : i32
    scf.if %17 {
      %c0_14 = arith.constant 0 : index
      %c0_15 = arith.constant 0 : index
      %21 = vector.load %arg10[%c0_14, %c0_15] : memref<8x256xf32, #tpu.memory_space<vmem>>, vector<8x256xf32>
      %22 = arith.addf %21, %11 : vector<8x256xf32>
      %c0_16 = arith.constant 0 : index
      %c0_17 = arith.constant 0 : index
      %23 = vector.load %arg10[%c0_16, %c0_17] : memref<8x256xf32, #tpu.memory_space<vmem>>, vector<8x256xf32>
      tpu.vector_store %arg10[%c0_16, %c0_17], %22 {strides = array<i32>} : memref<8x256xf32, #tpu.memory_space<vmem>>, vector<8x256xf32>,
    } else {
    }
    %c0_i32_12 = arith.constant 0 : i32
    %18 = arith.cmpi eq, %arg1, %c0_i32_12 : i32
    %19 = arith.extui %18 : i1 to i32
    %c0_i32_13 = arith.constant 0 : i32
    %20 = arith.cmpi ne, %19, %c0_i32_13 : i32
    scf.if %20 {
      %c0_14 = arith.constant 0 : index
      %c0_15 = arith.constant 0 : index
      %21 = vector.load %arg10[%c0_14, %c0_15] : memref<8x256xf32, #tpu.memory_space<vmem>>, vector<8x256xf32>
      %c0_16 = arith.constant 0 : index
      %c0_17 = arith.constant 0 : index
      %22 = vector.load %arg6[%c0_16, %c0_17] : memref<1x256xf32, #tpu.memory_space<vmem>>, vector<1x256xf32>
      %23 = vector.broadcast %22 : vector<1x256xf32> to vector<8x256xf32>
      %24 = arith.addf %21, %23 : vector<8x256xf32>
      %cst_18 = arith.constant 0.000000e+00 : f32
      %25 = vector.broadcast %cst_18 : f32 to vector<8x256xf32>
      %26 = arith.maximumf %24, %25 : vector<8x256xf32>
      %27 = arith.truncf %26 : vector<8x256xf32> to vector<8x256xbf16>
      %c0_19 = arith.constant 0 : index
      %c0_20 = arith.constant 0 : index
      %28 = vector.load %arg7[%c0_19, %c0_20] : memref<256x128xbf16, #tpu.memory_space<vmem>>, vector<256x128xbf16>
      %cst_21 = arith.constant dense<0.000000e+00> : vector<8x128xf32>
      %29 = tpu.matmul %27, %28, %cst_21 {dimension_numbers = #tpu.dot_dimension_numbers<[1], [0], [0], [1], [0, 0, 1, 1], [], []>} : vector<8x256xbf16>, vector<256x128xbf16>, vector<8x128xf32> -> vector<8x128xf32>
      %c0_22 = arith.constant 0 : index
      %c0_23 = arith.constant 0 : index
      %30 = vector.load %arg8[%c0_22, %c0_23] : memref<1x128xf32, #tpu.memory_space<vmem>>, vector<1x128xf32>
      %31 = vector.broadcast %30 : vector<1x128xf32> to vector<8x128xf32>
      %32 = arith.addf %29, %31 : vector<8x128xf32>
      %33 = tpu.transpose %32, [1, 0] : vector<8x128xf32> -> vector<128x8xf32>
      %34 = vector.extract_strided_slice %33 {offsets = [0, 0], sizes = [2, 8], strides = [1, 1]} : vector<128x8xf32> to vector<2x8xf32>
      %cst_24 = arith.constant 2.000000e+01 : f32
      %35 = vector.broadcast %cst_24 : f32 to vector<2x8xf32>
      %36 = arith.cmpf ogt, %34, %35 : vector<2x8xf32>
      %cst_25 = arith.constant 2.000000e+01 : f32
      %37 = vector.broadcast %cst_25 : f32 to vector<2x8xf32>
      %38 = arith.minimumf %34, %37 : vector<2x8xf32>
      %39 = math.exp %38 : vector<2x8xf32>
      %40 = math.log1p %39 : vector<2x8xf32>
      %41 = arith.select %36, %34, %40 : vector<2x8xi1>, vector<2x8xf32>
      %42 = tpu.iota {dimensions = array<i32: 0>} : vector<2x8xi32>
      %c1_i32 = arith.constant 1 : i32
      %43 = vector.broadcast %c1_i32 : i32 to vector<2x8xi32>
      %44 = arith.cmpi eq, %42, %43 : vector<2x8xi32>
      %45 = arith.select %44, %41, %34 : vector<2x8xi1>, vector<2x8xf32>
      %c0_26 = arith.constant 0 : index
      %c0_27 = arith.constant 0 : index
      %46 = vector.load %arg9[%c0_26, %c0_27] : memref<2x8xf32, #tpu.memory_space<vmem>>, vector<2x8xf32>
      tpu.vector_store %arg9[%c0_26, %c0_27], %45 {strides = array<i32>} : memref<2x8xf32, #tpu.memory_space<vmem>>, vector<2x8xf32>,
    } else {
    }
    return
  }
  func.func @transform_0(%arg0: i32, %arg1: i32) -> (i32, i32) {
    %c0_i32 = arith.constant 0 : i32
    %c0_i32_0 = arith.constant 0 : i32
    return %arg0, %c0_i32 : i32, i32
  }
  func.func @transform_1(%arg0: i32, %arg1: i32) -> (i32, i32) {
    %c0_i32 = arith.constant 0 : i32
    %c0_i32_0 = arith.constant 0 : i32
    return %c0_i32, %arg1 : i32, i32
  }
  func.func @transform_2(%arg0: i32, %arg1: i32) -> (i32, i32) {
    %c0_i32 = arith.constant 0 : i32
    %c0_i32_0 = arith.constant 0 : i32
    return %c0_i32, %arg1 : i32, i32
  }
  func.func @transform_3(%arg0: i32, %arg1: i32) -> (i32, i32) {
    %c0_i32 = arith.constant 0 : i32
    %c0_i32_0 = arith.constant 0 : i32
    return %arg1, %c0_i32 : i32, i32
  }
  func.func @transform_4(%arg0: i32, %arg1: i32) -> (i32, i32) {
    %c0_i32 = arith.constant 0 : i32
    %c0_i32_0 = arith.constant 0 : i32
    %c0_i32_1 = arith.constant 0 : i32
    return %c0_i32, %c0_i32_0 : i32, i32
  }
  func.func @transform_5(%arg0: i32, %arg1: i32) -> (i32, i32) {
    %c0_i32 = arith.constant 0 : i32
    %c0_i32_0 = arith.constant 0 : i32
    %c0_i32_1 = arith.constant 0 : i32
    return %c0_i32, %c0_i32_0 : i32, i32
  }
  func.func @transform_6(%arg0: i32, %arg1: i32) -> (i32, i32) {
    %c0_i32 = arith.constant 0 : i32
    %c0_i32_0 = arith.constant 0 : i32
    %c0_i32_1 = arith.constant 0 : i32
    return %c0_i32, %c0_i32_0 : i32, i32
  }
  func.func @transform_7(%arg0: i32, %arg1: i32) -> (i32, i32) {
    %c0_i32 = arith.constant 0 : i32
    %c0_i32_0 = arith.constant 0 : i32
    return %c0_i32, %arg0 : i32, i32
  }
}

</mosaic_0001>

<llo_original>
// kernel: tpu_custom_call.1
$region0: #{tpu_custom_call.1}
  #allocation0 [shape = 'u32[]', space=smem, size = 0x4, offset = 0x4, fixed_abs, tag = 'smem constant byte address 0x4 - core index']
  #allocation1 [shape = 'u32[144,128]{1,0:T(1,128)}', space=vmem, size = 0x12000, scoped, tag = 'internal scratch']
  #allocation2 [shape = 'f32[8,256]{1,0:T(8,128)}', space=vmem, size = 0x2000, scoped, tag = 'scratch operand']
  %s0 = inlined_call_operand.hbm [shape: f32[8,16], index: 0, kind: input, shape index: {}]
  %s1 = inlined_call_operand.hbm [shape: bf16[16,128], index: 1, kind: input, shape index: {}]
  %s2 = inlined_call_operand.vmem [shape: f32[1,128], index: 2, kind: input, shape index: {}]
  %s3 = inlined_call_operand.hbm [shape: bf16[128,256], index: 3, kind: input, shape index: {}]
  %s4 = inlined_call_operand.vmem [shape: f32[1,256], index: 4, kind: input, shape index: {}]
  %s5 = inlined_call_operand.hbm [shape: bf16[256,128], index: 5, kind: input, shape index: {}]
  %s6 = inlined_call_operand.vmem [shape: f32[1,128], index: 6, kind: input, shape index: {}]
  %s7 = inlined_call_operand.hbm [shape: f32[2,8], index: 7, kind: output, shape index: {}]
  %s8 = sld [smem:[#allocation0]]
  $region66: #{tpu_custom_call.1} parent=0
    _
  %s10 = ssub.s32 1, %s8
  %s11 = scalar_select 0, %s10, %s8
  $region1: #{tpu_custom_call.1} parent=0
    #allocation3 [shape = 'u8[4096]{0}', space=vmem, size = 0x1000, scoped, tag = 'input window, operand 0, single buffered']
    #allocation4 [shape = 's32[1]{0}', space=sflag, size = 0x4, scoped, tag = 'scoped memory for tpu_custom_call.1']
    #allocation5 [shape = 's32[1]{0}', space=sflag, size = 0x4, scoped, tag = 'scoped memory for tpu_custom_call.1']
    #allocation6 [shape = 'u8[4096]{0}', space=vmem, size = 0x1000, scoped, tag = 'input window, operand 1, single buffered']
    #allocation7 [shape = 's32[1]{0}', space=sflag, size = 0x4, scoped, tag = 'scoped memory for tpu_custom_call.1']
    #allocation8 [shape = 'u8[65536]{0}', space=vmem, size = 0x10000, scoped, tag = 'input window, operand 3, single buffered']
    #allocation9 [shape = 'u8[65536]{0}', space=vmem, size = 0x10000, scoped, tag = 'input window, operand 5, single buffered']
    #allocation10 [shape = 's32[1]{0}', space=sflag, size = 0x4, scoped, tag = 'scoped memory for tpu_custom_call.1']
    #allocation11 [shape = 'u8[1024]{0}', space=vmem, size = 0x400, scoped, tag = 'output window, operand 0, single buffered']
    %12 = vsyncpa [#allocation4], 0
    %13 = vsyncpa [#allocation7], 0
    %14 = vsyncpa [#allocation10], 0
    %15 = vsyncpa [#allocation5], 0
    // Predicated region
    $region2: #{tpu_custom_call.1} parent=1 // pred_check
      _
    $region3: #{tpu_custom_call.1} parent=1 // pred_check_branch
      %17 = sbr.rel (0) target = $region5
    $region4: #{tpu_custom_call.1} parent=1 // pred_region
      %s19 = ssub.s32 128, 128
      %20 = vsyncadd [#allocation4], %s19
      %s22 = sshll.u32 [#allocation3], 4
      %s23 = int_to_ptr.vmem [resolvable:$true] %s22
      %25 = dma.hbm_to_vmem [thread:$0]  %s0, 128, %s23, [#allocation4]
    $region5: #{tpu_custom_call.1} parent=1 // pred_fallthru
      _
    // Predicated region
    $region6: #{tpu_custom_call.1} parent=1 // pred_check
      _
    $region7: #{tpu_custom_call.1} parent=1 // pred_check_branch
      %27 = sbr.rel (0) target = $region9
    $region8: #{tpu_custom_call.1} parent=1 // pred_region
      %s29 = ssub.s32 128, 128
      %30 = vsyncadd [#allocation7], %s29
      %s31 = sshll.u32 [#allocation6], 4
      %s32 = int_to_ptr.vmem [resolvable:$true] %s31
      %37 = dma.hbm_to_vmem [thread:$0]  %s1, 128, %s32, [#allocation7], 64, 64, 4
    $region9: #{tpu_custom_call.1} parent=1 // pred_fallthru
      _
    // Predicated region
    $region10: #{tpu_custom_call.1} parent=1 // pred_check
      _
    $region11: #{tpu_custom_call.1} parent=1 // pred_check_branch
      %39 = sbr.rel (0) target = $region13
    $region12: #{tpu_custom_call.1} parent=1 // pred_region
      _
    $region13: #{tpu_custom_call.1} parent=1 // pred_fallthru
      _
    // Predicated region
    $region14: #{tpu_custom_call.1} parent=1 // pred_check
      _
    $region15: #{tpu_custom_call.1} parent=1 // pred_check_branch
      %41 = sbr.rel (0) target = $region17
    $region16: #{tpu_custom_call.1} parent=1 // pred_region
      %s43 = ssub.s32 2048, 2048
      %44 = vsyncadd [#allocation7], %s43
      %s45 = sshll.u32 [#allocation8], 4
      %s46 = int_to_ptr.vmem [resolvable:$true] %s45
      %51 = dma.hbm_to_vmem [thread:$0]  %s3, 2048, %s46, [#allocation7], 128, 128, 8
    $region17: #{tpu_custom_call.1} parent=1 // pred_fallthru
      _
    // Predicated region
    $region18: #{tpu_custom_call.1} parent=1 // pred_check
      _
    $region19: #{tpu_custom_call.1} parent=1 // pred_check_branch
      %53 = sbr.rel (0) target = $region21
    $region20: #{tpu_custom_call.1} parent=1 // pred_region
      _
    $region21: #{tpu_custom_call.1} parent=1 // pred_fallthru
      _
    // Predicated region
    $region22: #{tpu_custom_call.1} parent=1 // pred_check
      _
    $region23: #{tpu_custom_call.1} parent=1 // pred_check_branch
      %55 = sbr.rel (0) target = $region25
    $region24: #{tpu_custom_call.1} parent=1 // pred_region
      %s57 = ssub.s32 2048, 2048
      %58 = vsyncadd [#allocation10], %s57
      %s59 = sshll.u32 [#allocation9], 4
      %s60 = int_to_ptr.vmem [resolvable:$true] %s59
      %65 = dma.hbm_to_vmem [thread:$0]  %s5, 2048, %s60, [#allocation10], 64, 64, 4
    $region25: #{tpu_custom_call.1} parent=1 // pred_fallthru
      _
    // Predicated region
    $region26: #{tpu_custom_call.1} parent=1 // pred_check
      _
    $region27: #{tpu_custom_call.1} parent=1 // pred_check_branch
      %67 = sbr.rel (0) target = $region29
    $region28: #{tpu_custom_call.1} parent=1 // pred_region
      _
    $region29: #{tpu_custom_call.1} parent=1 // pred_fallthru
      _
    // Predicated region
    $region30: #{tpu_custom_call.1} parent=1 // pred_check
      _
    $region31: #{tpu_custom_call.1} parent=1 // pred_check_branch
      %69 = sbr.rel (0) target = $region33
    $region32: #{tpu_custom_call.1} parent=1 // pred_region
      %70 = dma.done [#allocation4], 128
    $region33: #{tpu_custom_call.1} parent=1 // pred_fallthru
      _
    // Predicated region
    $region34: #{tpu_custom_call.1} parent=1 // pred_check
      _
    $region35: #{tpu_custom_call.1} parent=1 // pred_check_branch
      %72 = sbr.rel (0) target = $region37
    $region36: #{tpu_custom_call.1} parent=1 // pred_region
      %73 = dma.done [#allocation7], 128
    $region37: #{tpu_custom_call.1} parent=1 // pred_fallthru
      _
    // Predicated region
    $region38: #{tpu_custom_call.1} parent=1 // pred_check
      _
    $region39: #{tpu_custom_call.1} parent=1 // pred_check_branch
      %75 = sbr.rel (0) target = $region41
    $region40: #{tpu_custom_call.1} parent=1 // pred_region
      %76 = dma.done [#allocation7], 2048
    $region41: #{tpu_custom_call.1} parent=1 // pred_fallthru
      _
    // Predicated region
    $region42: #{tpu_custom_call.1} parent=1 // pred_check
      _
    $region43: #{tpu_custom_call.1} parent=1 // pred_check_branch
      %78 = sbr.rel (0) target = $region45
    $region44: #{tpu_custom_call.1} parent=1 // pred_region
      %79 = dma.done [#allocation10], 2048
    $region45: #{tpu_custom_call.1} parent=1 // pred_fallthru
      _
    %v81 = vld [vmem:[#allocation3] sm:$0xff]
    %v82 = vpack.c.bf16 %v81, %v81
    %v83 = vld [vmem:[#allocation6] sm:$0xf]
    %v84 = vld [vmem:[#allocation6 + $0x4] sm:$0xf]
    %v85 = vld [vmem:[%s2] sm:$0x1]
    %v87 = vlaneseq
    %v88 = vshrl.u32 %v87, 7
    %v89 = vsub.s32 0, %v88
    %v90 = vrot.slane %v85, %v89
    %v94 = vunpack.c.l.b16 %v83
    %v95 = vunpack.c.l.b16 %v84
    %v96 = vpack.c.b16 %v95, %v94
    %vm98 = vcmask 130048
    %v100 = vsel %vm98, %v82, 0
    %102 = vmatprep.subr.bf16.mxu0 0
    %103 = vmatpush1.bf16.msra.mxu0 %v96
    %104 = vmatprep.subr.bf16.mxu0 0
    %105 = vmatpush1.bf16.msra.mxu0 0
    %106 = vmatprep.subr.bf16.mxu0 0
    %107 = vmatpush1.bf16.msra.mxu0 0
    %108 = vmatprep.subr.bf16.mxu0 0
    %109 = vmatpush1.bf16.msra.mxu0 0
    %110 = vmatprep.subr.bf16.mxu0 0
    %111 = vmatpush1.bf16.msra.mxu0 0
    %112 = vmatprep.subr.bf16.mxu0 0
    %113 = vmatpush1.bf16.msra.mxu0 0
    %114 = vmatprep.subr.bf16.mxu0 0
    %115 = vmatpush1.bf16.msra.mxu0 0
    %116 = vmatprep.subr.bf16.mxu0 0
    %117 = vmatpush1.bf16.msra.mxu0 0
    %118 = vmatprep.subr.bf16.mxu0 0
    %119 = vmatpush1.bf16.msra.mxu0 0
    %120 = vmatprep.subr.bf16.mxu0 0
    %121 = vmatpush1.bf16.msra.mxu0 0
    %122 = vmatprep.subr.bf16.mxu0 0
    %123 = vmatpush1.bf16.msra.mxu0 0
    %124 = vmatprep.subr.bf16.mxu0 0
    %125 = vmatpush1.bf16.msra.mxu0 0
    %126 = vmatprep.subr.bf16.mxu0 0
    %127 = vmatpush1.bf16.msra.mxu0 0
    %128 = vmatprep.subr.bf16.mxu0 0
    %129 = vmatpush1.bf16.msra.mxu0 0
    %130 = vmatprep.subr.bf16.mxu0 0
    %131 = vmatpush1.bf16.msra.mxu0 0
    %132 = vmatprep.subr.bf16.mxu0 0
    %133 = vmatpush1.bf16.msra.mxu0 0
    %134 = vmatprep.mubr.bf16.mxu0 0
    %135 = vmatmul.mubr.bf16.gmra.mrb[0].mxu0 %v100
    %v136 = vpop.f32.mrb[0].mxu0
    %v137 = vadd.f32 %v90, %v136
    %v138 = vpop.f32.mrb[0].mxu0
    %v139 = vpop.f32.mrb[0].mxu0
    %v140 = vpop.f32.mrb[0].mxu0
    %141 = vdwg.mxu0
    %v142 = vmax.f32 %v137, 0.0
    %v143 = vpack.c.bf16 %v142, %v142
    %v144 = vld [vmem:[#allocation8] sm:$0xff]
    %v145 = vld [vmem:[#allocation8 + $0x8] sm:$0xff]
    %v146 = vld [vmem:[#allocation8 + $0x10] sm:$0xff]
    %v147 = vld [vmem:[#allocation8 + $0x18] sm:$0xff]
    %v148 = vld [vmem:[#allocation8 + $0x20] sm:$0xff]
    %v149 = vld [vmem:[#allocation8 + $0x28] sm:$0xff]
    %v150 = vld [vmem:[#allocation8 + $0x30] sm:$0xff]
    %v151 = vld [vmem:[#allocation8 + $0x38] sm:$0xff]
    %v152 = vld [vmem:[#allocation8 + $0x40] sm:$0xff]
    %v153 = vld [vmem:[#allocation8 + $0x48] sm:$0xff]
    %v154 = vld [vmem:[#allocation8 + $0x50] sm:$0xff]
    %v155 = vld [vmem:[#allocation8 + $0x58] sm:$0xff]
    %v156 = vld [vmem:[#allocation8 + $0x60] sm:$0xff]
    %v157 = vld [vmem:[#allocation8 + $0x68] sm:$0xff]
    %v158 = vld [vmem:[#allocation8 + $0x70] sm:$0xff]
    %v159 = vld [vmem:[#allocation8 + $0x78] sm:$0xff]
    %v176 = vunpack.c.l.b16 %v144
    %v177 = vunpack.c.h.b16 %v144
    %v178 = vunpack.c.l.b16 %v145
    %v179 = vunpack.c.h.b16 %v145
    %v180 = vunpack.c.l.b16 %v146
    %v181 = vunpack.c.h.b16 %v146
    %v182 = vunpack.c.l.b16 %v147
    %v183 = vunpack.c.h.b16 %v147
    %v184 = vunpack.c.l.b16 %v148
    %v185 = vunpack.c.h.b16 %v148
    %v186 = vunpack.c.l.b16 %v149
    %v187 = vunpack.c.h.b16 %v149
    %v188 = vunpack.c.l.b16 %v150
    %v189 = vunpack.c.h.b16 %v150
    %v190 = vunpack.c.l.b16 %v151
    %v191 = vunpack.c.h.b16 %v151
    %v192 = vunpack.c.l.b16 %v152
    %v193 = vunpack.c.h.b16 %v152
    %v194 = vunpack.c.l.b16 %v153
    %v195 = vunpack.c.h.b16 %v153
    %v196 = vunpack.c.l.b16 %v154
    %v197 = vunpack.c.h.b16 %v154
    %v198 = vunpack.c.l.b16 %v155
    %v199 = vunpack.c.h.b16 %v155
    %v200 = vunpack.c.l.b16 %v156
    %v201 = vunpack.c.h.b16 %v156
    %v202 = vunpack.c.l.b16 %v157
    %v203 = vunpack.c.h.b16 %v157
    %v204 = vunpack.c.l.b16 %v158
    %v205 = vunpack.c.h.b16 %v158
    %v206 = vunpack.c.l.b16 %v159
    %v207 = vunpack.c.h.b16 %v159
    %v208 = vpack.c.b16 %v178, %v176
    %v209 = vpack.c.b16 %v179, %v177
    %v210 = vpack.c.b16 %v182, %v180
    %v211 = vpack.c.b16 %v183, %v181
    %v212 = vpack.c.b16 %v186, %v184
    %v213 = vpack.c.b16 %v187, %v185
    %v214 = vpack.c.b16 %v190, %v188
    %v215 = vpack.c.b16 %v191, %v189
    %v216 = vpack.c.b16 %v194, %v192
    %v217 = vpack.c.b16 %v195, %v193
    %v218 = vpack.c.b16 %v198, %v196
    %v219 = vpack.c.b16 %v199, %v197
    %v220 = vpack.c.b16 %v202, %v200
    %v221 = vpack.c.b16 %v203, %v201
    %v222 = vpack.c.b16 %v206, %v204
    %v223 = vpack.c.b16 %v207, %v205
    %240 = vmatprep.subr.bf16.mxu0 %v209
    %241 = vmatpush1.bf16.msra.mxu0 %v208
    %242 = vmatprep.subr.bf16.mxu0 %v211
    %243 = vmatpush1.bf16.msra.mxu0 %v210
    %244 = vmatprep.subr.bf16.mxu0 %v213
    %245 = vmatpush1.bf16.msra.mxu0 %v212
    %246 = vmatprep.subr.bf16.mxu0 %v215
    %247 = vmatpush1.bf16.msra.mxu0 %v214
    %248 = vmatprep.subr.bf16.mxu0 %v217
    %249 = vmatpush1.bf16.msra.mxu0 %v216
    %250 = vmatprep.subr.bf16.mxu0 %v219
    %251 = vmatpush1.bf16.msra.mxu0 %v218
    %252 = vmatprep.subr.bf16.mxu0 %v221
    %253 = vmatpush1.bf16.msra.mxu0 %v220
    %254 = vmatprep.subr.bf16.mxu0 %v223
    %255 = vmatpush1.bf16.msra.mxu0 %v222
    %256 = vmatprep.subr.bf16.mxu0 0
    %257 = vmatpush1.bf16.msra.mxu0 0
    %258 = vmatprep.subr.bf16.mxu0 0
    %259 = vmatpush1.bf16.msra.mxu0 0
    %260 = vmatprep.subr.bf16.mxu0 0
    %261 = vmatpush1.bf16.msra.mxu0 0
    %262 = vmatprep.subr.bf16.mxu0 0
    %263 = vmatpush1.bf16.msra.mxu0 0
    %264 = vmatprep.subr.bf16.mxu0 0
    %265 = vmatpush1.bf16.msra.mxu0 0
    %266 = vmatprep.subr.bf16.mxu0 0
    %267 = vmatpush1.bf16.msra.mxu0 0
    %268 = vmatprep.subr.bf16.mxu0 0
    %269 = vmatpush1.bf16.msra.mxu0 0
    %270 = vmatprep.subr.bf16.mxu0 0
    %271 = vmatpush1.bf16.msra.mxu0 0
    %272 = vmatprep.mubr.bf16.mxu0 0
    %273 = vmatmul.mubr.bf16.gmra.mrb[0].mxu0 %v143
    %v274 = vpop.f32.mrb[0].mxu0
    %v275 = vadd.f32 0.0, %v274
    %v276 = vpop.f32.mrb[0].mxu0
    %v277 = vadd.f32 0.0, %v276
    %v278 = vpop.f32.mrb[0].mxu0
    %v279 = vpop.f32.mrb[0].mxu0
    %280 = vdwg.mxu0
    %p281 = scmp.eq.s32.totalorder 0, 0
    // Predicated region
    $region46: #{tpu_custom_call.1} parent=1 // pred_check
      %p282 = pneg %p281
    $region47: #{tpu_custom_call.1} parent=1 // pred_check_branch
      %284 = sbr.rel (%p282) target = $region49
    $region48: #{tpu_custom_call.1} parent=1 // pred_region
      %285 = vst [vmem:[#allocation2] sm:$0xff] %v275
      %286 = vst [vmem:[#allocation2 + $0x8] sm:$0xff] %v277
    $region49: #{tpu_custom_call.1} parent=1 // pred_fallthru
      _
    %p287 = scmp.gt.s32.totalorder 0, 0
    // Predicated region
    $region50: #{tpu_custom_call.1} parent=1 // pred_check
      %p288 = pneg %p287
    $region51: #{tpu_custom_call.1} parent=1 // pred_check_branch
      %290 = sbr.rel (%p288) target = $region53
    $region52: #{tpu_custom_call.1} parent=1 // pred_region
      %v291 = vld [vmem:[#allocation2] sm:$0xff]
      %v292 = vld [vmem:[#allocation2 + $0x8] sm:$0xff]
      %v293 = vadd.f32 %v291, %v275
      %v294 = vadd.f32 %v292, %v277
      %295 = vst [vmem:[#allocation2] sm:$0xff] %v293
      %296 = vst [vmem:[#allocation2 + $0x8] sm:$0xff] %v294
    $region53: #{tpu_custom_call.1} parent=1 // pred_fallthru
      _
    // Predicated region
    $region54: #{tpu_custom_call.1} parent=1 // pred_check
      %p297 = pneg %p281
    $region55: #{tpu_custom_call.1} parent=1 // pred_check_branch
      %299 = sbr.rel (%p297) target = $region57
    $region56: #{tpu_custom_call.1} parent=1 // pred_region
      %v300 = vld [vmem:[#allocation2] sm:$0xff]
      %v301 = vld [vmem:[#allocation2 + $0x8] sm:$0xff]
      %v302 = vld [vmem:[%s4] sm:$0x3]
      %v304 = vlaneseq
      %v305 = vshrl.u32 %v304, 7
      %v306 = vsub.s32 0, %v305
      %v307 = vrot.slane %v302, %v306
      %v308 = vlaneseq
      %v309 = vshrl.u32 %v308, 7
      %v310 = vsub.s32 1, %v309
      %v311 = vrot.slane %v302, %v310
      %v314 = vadd.f32 %v300, %v307
      %v315 = vadd.f32 %v301, %v311
      %v316 = vmax.f32 %v314, 0.0
      %v317 = vmax.f32 %v315, 0.0
      %v318 = vpack.c.bf16 %v316, %v316
      %v319 = vpack.c.bf16 %v317, %v317
      %v320 = vld [vmem:[#allocation9] sm:$0xf]
      %v321 = vld [vmem:[#allocation9 + $0x4] sm:$0xf]
      %v322 = vld [vmem:[#allocation9 + $0x8] sm:$0xf]
      %v323 = vld [vmem:[#allocation9 + $0xc] sm:$0xf]
      %v324 = vld [vmem:[#allocation9 + $0x10] sm:$0xf]
      %v325 = vld [vmem:[#allocation9 + $0x14] sm:$0xf]
      %v326 = vld [vmem:[#allocation9 + $0x18] sm:$0xf]
      %v327 = vld [vmem:[#allocation9 + $0x1c] sm:$0xf]
      %v328 = vld [vmem:[#allocation9 + $0x20] sm:$0xf]
      %v329 = vld [vmem:[#allocation9 + $0x24] sm:$0xf]
      %v330 = vld [vmem:[#allocation9 + $0x28] sm:$0xf]
      %v331 = vld [vmem:[#allocation9 + $0x2c] sm:$0xf]
      %v332 = vld [vmem:[#allocation9 + $0x30] sm:$0xf]
      %v333 = vld [vmem:[#allocation9 + $0x34] sm:$0xf]
      %v334 = vld [vmem:[#allocation9 + $0x38] sm:$0xf]
      %v335 = vld [vmem:[#allocation9 + $0x3c] sm:$0xf]
      %v336 = vld [vmem:[#allocation9 + $0x40] sm:$0xf]
      %v337 = vld [vmem:[#allocation9 + $0x44] sm:$0xf]
      %v338 = vld [vmem:[#allocation9 + $0x48] sm:$0xf]
      %v339 = vld [vmem:[#allocation9 + $0x4c] sm:$0xf]
      %v340 = vld [vmem:[#allocation9 + $0x50] sm:$0xf]
      %v341 = vld [vmem:[#allocation9 + $0x54] sm:$0xf]
      %v342 = vld [vmem:[#allocation9 + $0x58] sm:$0xf]
      %v343 = vld [vmem:[#allocation9 + $0x5c] sm:$0xf]
      %v344 = vld [vmem:[#allocation9 + $0x60] sm:$0xf]
      %v345 = vld [vmem:[#allocation9 + $0x64] sm:$0xf]
      %v346 = vld [vmem:[#allocation9 + $0x68] sm:$0xf]
      %v347 = vld [vmem:[#allocation9 + $0x6c] sm:$0xf]
      %v348 = vld [vmem:[#allocation9 + $0x70] sm:$0xf]
      %v349 = vld [vmem:[#allocation9 + $0x74] sm:$0xf]
      %v350 = vld [vmem:[#allocation9 + $0x78] sm:$0xf]
      %v351 = vld [vmem:[#allocation9 + $0x7c] sm:$0xf]
      %v352 = vld [vmem:[%s6] sm:$0x1]
      %v354 = vlaneseq
      %v355 = vshrl.u32 %v354, 7
      %v356 = vsub.s32 0, %v355
      %v357 = vrot.slane %v352, %v356
      %v391 = vunpack.c.l.b16 %v320
      %v392 = vunpack.c.l.b16 %v321
      %v393 = vunpack.c.l.b16 %v322
      %v394 = vunpack.c.l.b16 %v323
      %v395 = vunpack.c.l.b16 %v324
      %v396 = vunpack.c.l.b16 %v325
      %v397 = vunpack.c.l.b16 %v326
      %v398 = vunpack.c.l.b16 %v327
      %v399 = vunpack.c.l.b16 %v328
      %v400 = vunpack.c.l.b16 %v329
      %v401 = vunpack.c.l.b16 %v330
      %v402 = vunpack.c.l.b16 %v331
      %v403 = vunpack.c.l.b16 %v332
      %v404 = vunpack.c.l.b16 %v333
      %v405 = vunpack.c.l.b16 %v334
      %v406 = vunpack.c.l.b16 %v335
      %v407 = vunpack.c.l.b16 %v336
      %v408 = vunpack.c.l.b16 %v337
      %v409 = vunpack.c.l.b16 %v338
      %v410 = vunpack.c.l.b16 %v339
      %v411 = vunpack.c.l.b16 %v340
      %v412 = vunpack.c.l.b16 %v341
      %v413 = vunpack.c.l.b16 %v342
      %v414 = vunpack.c.l.b16 %v343
      %v415 = vunpack.c.l.b16 %v344
      %v416 = vunpack.c.l.b16 %v345
      %v417 = vunpack.c.l.b16 %v346
      %v418 = vunpack.c.l.b16 %v347
      %v419 = vunpack.c.l.b16 %v348
      %v420 = vunpack.c.l.b16 %v349
      %v421 = vunpack.c.l.b16 %v350
      %v422 = vunpack.c.l.b16 %v351
      %v423 = vpack.c.b16 %v392, %v391
      %v424 = vpack.c.b16 %v394, %v393
      %v425 = vpack.c.b16 %v396, %v395
      %v426 = vpack.c.b16 %v398, %v397
      %v427 = vpack.c.b16 %v400, %v399
      %v428 = vpack.c.b16 %v402, %v401
      %v429 = vpack.c.b16 %v404, %v403
      %v430 = vpack.c.b16 %v406, %v405
      %v431 = vpack.c.b16 %v408, %v407
      %v432 = vpack.c.b16 %v410, %v409
      %v433 = vpack.c.b16 %v412, %v411
      %v434 = vpack.c.b16 %v414, %v413
      %v435 = vpack.c.b16 %v416, %v415
      %v436 = vpack.c.b16 %v418, %v417
      %v437 = vpack.c.b16 %v420, %v419
      %v438 = vpack.c.b16 %v422, %v421
      %455 = vmatprep.subr.bf16.mxu0 0
      %456 = vmatpush1.bf16.msra.mxu0 %v423
      %457 = vmatprep.subr.bf16.mxu0 0
      %458 = vmatpush1.bf16.msra.mxu0 %v424
      %459 = vmatprep.subr.bf16.mxu0 0
      %460 = vmatpush1.bf16.msra.mxu0 %v425
      %461 = vmatprep.subr.bf16.mxu0 0
      %462 = vmatpush1.bf16.msra.mxu0 %v426
      %463 = vmatprep.subr.bf16.mxu0 0
      %464 = vmatpush1.bf16.msra.mxu0 %v427
      %465 = vmatprep.subr.bf16.mxu0 0
      %466 = vmatpush1.bf16.msra.mxu0 %v428
      %467 = vmatprep.subr.bf16.mxu0 0
      %468 = vmatpush1.bf16.msra.mxu0 %v429
      %469 = vmatprep.subr.bf16.mxu0 0
      %470 = vmatpush1.bf16.msra.mxu0 %v430
      %471 = vmatprep.subr.bf16.mxu0 0
      %472 = vmatpush1.bf16.msra.mxu0 %v431
      %473 = vmatprep.subr.bf16.mxu0 0
      %474 = vmatpush1.bf16.msra.mxu0 %v432
      %475 = vmatprep.subr.bf16.mxu0 0
      %476 = vmatpush1.bf16.msra.mxu0 %v433
      %477 = vmatprep.subr.bf16.mxu0 0
      %478 = vmatpush1.bf16.msra.mxu0 %v434
      %479 = vmatprep.subr.bf16.mxu0 0
      %480 = vmatpush1.bf16.msra.mxu0 %v435
      %481 = vmatprep.subr.bf16.mxu0 0
      %482 = vmatpush1.bf16.msra.mxu0 %v436
      %483 = vmatprep.subr.bf16.mxu0 0
      %484 = vmatpush1.bf16.msra.mxu0 %v437
      %485 = vmatprep.subr.bf16.mxu0 0
      %486 = vmatpush1.bf16.msra.mxu0 %v438
      %487 = vmatprep.mubr.bf16.mxu0 %v319
      %488 = vmatmul.mubr.bf16.gmra.mrb[0].mxu0 %v318
      %v489 = vpop.f32.mrb[0].mxu0
      %v490 = vadd.f32 %v357, %v489
      %v491 = vpop.f32.mrb[0].mxu0
      %v492 = vpop.f32.mrb[0].mxu0
      %v493 = vpop.f32.mrb[0].mxu0
      %494 = vdwg.mxu0
      %495 = vxpose.xlu0.b32.start [1/16] %v490, 128
      %496 = vxpose.xlu0.b32.cont [2/16] 0.0, 128
      %497 = vxpose.xlu0.b32.cont [3/16] 0.0, 128
      %498 = vxpose.xlu0.b32.cont [4/16] 0.0, 128
      %499 = vxpose.xlu0.b32.cont [5/16] 0.0, 128
      %500 = vxpose.xlu0.b32.cont [6/16] 0.0, 128
      %501 = vxpose.xlu0.b32.cont [7/16] 0.0, 128
      %502 = vxpose.xlu0.b32.cont [8/16] 0.0, 128
      %503 = vxpose.xlu0.b32.cont [9/16] 0.0, 128
      %504 = vxpose.xlu0.b32.cont [10/16] 0.0, 128
      %505 = vxpose.xlu0.b32.cont [11/16] 0.0, 128
      %506 = vxpose.xlu0.b32.cont [12/16] 0.0, 128
      %507 = vxpose.xlu0.b32.cont [13/16] 0.0, 128
      %508 = vxpose.xlu0.b32.cont [14/16] 0.0, 128
      %509 = vxpose.xlu0.b32.cont [15/16] 0.0, 128
      %510 = vxpose.xlu0.b32.end [16/16] 0.0, 128
      %v511 = vpop.trf.xlu0
      %v512 = vpop.trf.xlu0
      %v513 = vpop.trf.xlu0
      %v514 = vpop.trf.xlu0
      %v515 = vpop.trf.xlu0
      %v516 = vpop.trf.xlu0
      %v517 = vpop.trf.xlu0
      %v518 = vpop.trf.xlu0
      %v519 = vpop.trf.xlu0
      %v520 = vpop.trf.xlu0
      %v521 = vpop.trf.xlu0
      %v522 = vpop.trf.xlu0
      %v523 = vpop.trf.xlu0
      %v524 = vpop.trf.xlu0
      %v525 = vpop.trf.xlu0
      %v526 = vpop.trf.xlu0
      %vm527 = vcmp.gt.f32.partialorder %v511, 20.0
      %v528 = vmin.f32 %v511, 20.0
      %v529 = vmul.f32 %v528, 1.442695
      %v530 = vpow.pop %v529
      %v531 = vadd.f32 %v530, 1.0
      %v532 = vlog2.pop %v531
      %v533 = vmul.f32 %v532, 0.6931472
      %v534 = vmul.f32 -0.5, %v530
      %v535 = vadd.f32 %v534, 1.0
      %v536 = vmul.f32 %v535, %v530
      %v537 = vand.u32 2147483647, %v530
      %vm538 = vcmp.lt.f32.partialorder %v537, 0.0004427343
      %v539 = vsel %vm538, %v536, %v533
      %v540 = vsel %vm527, %v511, %v539
      %v541 = vlaneseq
      %v542 = vshrl.u32 %v541, 7
      %vm543 = vcmp.eq.s32.totalorder %v542, 1
      %v544 = vsel %vm543, %v540, %v511
      %vm545 = vcmask 58368
      %546 = vst.msk [vmem:[#allocation11] sm:$0x3] %vm545, %v544
    $region57: #{tpu_custom_call.1} parent=1 // pred_fallthru
      _
    // Predicated region
    $region58: #{tpu_custom_call.1} parent=1 // pred_check
      _
    $region59: #{tpu_custom_call.1} parent=1 // pred_check_branch
      %548 = sbr.rel (0) target = $region61
    $region60: #{tpu_custom_call.1} parent=1 // pred_region
      %s550 = ssub.s32 32, 32
      %551 = vsyncadd [#allocation5], %s550
      %s553 = sshll.u32 [#allocation11], 4
      %s554 = int_to_ptr.vmem [resolvable:$true] %s553
      %556 = dma.vmem_to_hbm [thread:$0]  %s554, 32, %s7, [#allocation5]
    $region61: #{tpu_custom_call.1} parent=1 // pred_fallthru
      _
    // Predicated region
    $region62: #{tpu_custom_call.1} parent=1 // pred_check
      _
    $region63: #{tpu_custom_call.1} parent=1 // pred_check_branch
      %558 = sbr.rel (0) target = $region65
    $region64: #{tpu_custom_call.1} parent=1 // pred_region
      %559 = dma.done [#allocation5], 32
    $region65: #{tpu_custom_call.1} parent=1 // pred_fallthru
      _
    %560 = vsyncpa [#allocation4], 1
    %561 = vsyncpa [#allocation7], 1
    %562 = vsyncpa [#allocation10], 1
    %563 = vsyncpa [#allocation5], 1

</llo_original>
